<compile_context>
chip_gen: v7x
topology: tpu7x:2x2x1
jax: 0.10.0
libtpu: 0.0.40
codegen_flags: <defaults>
</compile_context>

<pallas_src>
import functools

import jax
import jax.numpy as jnp
from jax.experimental import pallas as pl
from jax.experimental.pallas import tpu as pltpu


def _round_up(x: int, m: int) -> int:
    return ((x + m - 1) // m) * m


def _cdiv(a: int, b: int) -> int:
    return (a + b - 1) // b


def _weighted_l1_kernel(pred_ref, targ_ref, w_ref, out_ref, *, tile_rows, n_rows):
    # Difference in f32 regardless of input dtype (bf16 inputs stream natively).
    p = pred_ref[...].astype(jnp.float32)
    t = targ_ref[...].astype(jnp.float32)
    d = jnp.abs(p - t)

    # Fused weighting + column reduction on the (otherwise idle) MXU:
    #   (tile_rows, C) @ (C, 1) -> (tile_rows, 1), accumulated in f32.
    rowsum = jnp.dot(d, w_ref[...], preferred_element_type=jnp.float32)

    # Row-overhang mask: only (tile_rows, 1) work, only when overhang exists.
    # It also discards any garbage/NaN contributions from out-of-bounds rows.
    if n_rows % tile_rows != 0:
        row = (pl.program_id(0) * tile_rows
               + jax.lax.broadcasted_iota(jnp.int32, rowsum.shape, 0))
        rowsum = jnp.where(row < n_rows, rowsum, jnp.float32(0.0))

    out_ref[0, 0] = jnp.sum(rowsum)


def weighted_l1_loss(pred, targ, params, *, max_tile_bytes=6 * 1024 * 1024):
    """Pallas implementation of WeightedL1Loss.forward.

    Args:
      pred, targ: [B, H, S] arrays (any float dtype; bf16 is fine).
      params: (percent_horizon, weight) static floats.
      max_tile_bytes: per-input VMEM tile budget (row-tile size derived from it).

    Returns:
      dict with 'loss' and 'L1' (same scalar), matching the PyTorch module.
    """
    assert pred.shape == targ.shape and pred.ndim == 3
    assert pred.dtype == targ.dtype
    B, H, S = pred.shape
    cutoff = int(H * float(params[0]))          # same truncation as torch int()
    weight = float(params[1])
    C = H * S
    total_elems = B * H * S
    itemsize = jnp.dtype(pred.dtype).itemsize

    # TODO(synk): add a second lane-aligned grid axis over C for very wide
    # inputs; for this module C = horizon*states is small, so just guard.
    assert 8 * C * itemsize <= 8 * 1024 * 1024, (
        "H*S too wide for a single full-width row tile; add column tiling")

    # Flatten so the weighted horizon prefix is a contiguous column prefix.
    pred2 = pred.reshape(B, C)
    targ2 = targ.reshape(B, C)

    # Static per-column weight vector: `weight` on the horizon prefix, else 1.
    cutoff_cols = cutoff * S
    w_col = jnp.where(jnp.arange(C) < cutoff_cols,
                      jnp.float32(weight), jnp.float32(1.0)).reshape(C, 1)

    # Row-tile sizing: big lane-dense blocks, multiple of 8 sublanes.
    rows_target = max(8, (max_tile_bytes // (C * itemsize)) // 8 * 8)
    rows_cap = _round_up(B, 8)
    if B >= 16:
        # Guarantee >= 2 grid steps so the parallel axis can be sharded across
        # both TensorCores on v7x (no effect on v5e/v6e single-TC chips).
        rows_cap = min(rows_cap, _round_up(_cdiv(B, 2), 8))
    tile_rows = int(min(rows_target, rows_cap))
    grid0 = _cdiv(B, tile_rows)

    # Live footprint ~ 2 inputs x 2 pipeline buffers x tile (+ w + partials).
    tile_bytes = tile_rows * C * itemsize
    vmem_limit = int(min(48 * 1024 * 1024,
                         max(32 * 1024 * 1024, 4 * tile_bytes + 2 * 1024 * 1024)))

    kernel = functools.partial(_weighted_l1_kernel,
                               tile_rows=tile_rows, n_rows=B)

    cost = pl.CostEstimate(
        flops=5 * B * C,                                   # sub+abs+casts+matvec
        transcendentals=0,
        bytes_accessed=2 * B * C * itemsize + C * 4 + 4 * grid0,
    )

    partials = pl.pallas_call(
        kernel,
        out_shape=jax.ShapeDtypeStruct((grid0, 1), jnp.float32),
        grid=(grid0,),
        in_specs=[
            pl.BlockSpec((tile_rows, C), lambda i: (i, 0)),
            pl.BlockSpec((tile_rows, C), lambda i: (i, 0)),
            # Constant block index -> fetched once, stays resident in VMEM.
            pl.BlockSpec((C, 1), lambda i: (0, 0)),
        ],
        out_specs=pl.BlockSpec((1, 1), lambda i: (i, 0),
                               memory_space=pltpu.MemorySpace.SMEM),
        compiler_params=pltpu.CompilerParams(
            dimension_semantics=("parallel",),   # independent tiles -> megacore
            vmem_limit_bytes=vmem_limit,
        ),
        cost_estimate=cost,
    )(pred2, targ2, w_col)

    # Tiny final reduction + mean outside the kernel.
    loss = jnp.sum(partials) / jnp.float32(total_elems)
    return {"loss": loss, "L1": loss}


def _ref_loss(pred, targ, params):
    _, H, _ = pred.shape
    cutoff = int(H * params[0])
    w = jnp.where(jnp.arange(H)[None, :, None] < cutoff,
                  jnp.float32(params[1]), jnp.float32(1.0))
    d = jnp.abs(pred.astype(jnp.float32) - targ.astype(jnp.float32))
    return jnp.mean(w * d)


if __name__ == "__main__":
    # Module params: (percent horizon, weight > 1)
    params = (0.25, 2.0)

    key = jax.random.PRNGKey(0)
    k1, k2, k3, k4 = jax.random.split(key, 4)

    # Case 1: small shape from the module spec [batch, horizon, states].
    B, H, S = 2, 8, 32
    pred = jax.random.normal(k1, (B, H, S), dtype=jnp.float32)
    targ = jax.random.normal(k2, (B, H, S), dtype=jnp.float32)

    result = weighted_l1_loss(pred, targ, params)
    loss = jax.block_until_ready(result["loss"])
    ref = _ref_loss(pred, targ, params)
    assert jnp.allclose(loss, ref, rtol=5e-4, atol=1e-6), (loss, ref)

    # Case 2: bf16 inputs + small forced tile to exercise the multi-tile grid
    # (grid0 >= 2, exercising the megacore path) and row-overhang masking.
    B2, H2, S2 = 20, 8, 32
    pred_b = jax.random.normal(k3, (B2, H2, S2), dtype=jnp.float32).astype(jnp.bfloat16)
    targ_b = jax.random.normal(k4, (B2, H2, S2), dtype=jnp.float32).astype(jnp.bfloat16)
    res2 = weighted_l1_loss(pred_b, targ_b, params,
                            max_tile_bytes=8 * H2 * S2 * 2)
    loss2 = jax.block_until_ready(res2["loss"])
    ref2 = _ref_loss(pred_b, targ_b, params)
    assert jnp.allclose(loss2, ref2, rtol=2e-3, atol=1e-4), (loss2, ref2)

    print("KERNEL_OK")
</pallas_src>

<mosaic_0001>
module attributes {stable_mosaic.version = 11 : i64} {
  func.func @_weighted_l1_kernel(%arg0: i32, %arg1: memref<8x256xf32, #tpu.memory_space<vmem>>, %arg2: memref<8x256xf32, #tpu.memory_space<vmem>>, %arg3: memref<256x1xf32, #tpu.memory_space<vmem>>, %arg4: memref<1x1xf32, #tpu.memory_space<smem>>) attributes {dimension_semantics = [#tpu.dimension_semantics<parallel>], iteration_bounds = array<i64: 1>, scalar_prefetch = 0 : i64, scratch_operands = 0 : i64, tpu.core_type = #tpu.core_type<tc>, window_params = [{transform_indices = @transform_0, window_bounds = array<i64: 8, 256>}, {transform_indices = @transform_1, window_bounds = array<i64: 8, 256>}, {pipeline_mode = #tpu.pipeline_mode<synchronous>, transform_indices = @transform_2, window_bounds = array<i64: 256, 1>}, {transform_indices = @transform_3, window_bounds = array<i64: 1, 1>}]} {
    %c0 = arith.constant 0 : index
    %c0_0 = arith.constant 0 : index
    %0 = vector.load %arg1[%c0, %c0_0] : memref<8x256xf32, #tpu.memory_space<vmem>>, vector<8x256xf32>
    %c0_1 = arith.constant 0 : index
    %c0_2 = arith.constant 0 : index
    %1 = vector.load %arg2[%c0_1, %c0_2] : memref<8x256xf32, #tpu.memory_space<vmem>>, vector<8x256xf32>
    %2 = arith.subf %0, %1 : vector<8x256xf32>
    %3 = math.absf %2 : vector<8x256xf32>
    %c0_3 = arith.constant 0 : index
    %c0_4 = arith.constant 0 : index
    %4 = vector.load %arg3[%c0_3, %c0_4] : memref<256x1xf32, #tpu.memory_space<vmem>>, vector<256x1xf32>
    %cst = arith.constant dense<0.000000e+00> : vector<8x1xf32>
    %5 = tpu.matmul %3, %4, %cst {dimension_numbers = #tpu.dot_dimension_numbers<[1], [0], [0], [1], [0, 0, 1, 1], [], []>} : vector<8x256xf32>, vector<256x1xf32>, vector<8x1xf32> -> vector<8x1xf32>
    %c8_i32 = arith.constant 8 : i32
    %6 = arith.muli %arg0, %c8_i32 : i32
    %7 = tpu.iota {dimensions = array<i32: 0>} : vector<8x1xi32>
    %8 = vector.broadcast %6 : i32 to vector<8x1xi32>
    %9 = arith.addi %8, %7 : vector<8x1xi32>
    %c2_i32 = arith.constant 2 : i32
    %10 = vector.broadcast %c2_i32 : i32 to vector<8x1xi32>
    %11 = arith.cmpi slt, %9, %10 : vector<8x1xi32>
    %cst_5 = arith.constant 0.000000e+00 : f32
    %12 = vector.broadcast %cst_5 : f32 to vector<8x1xf32>
    %13 = arith.select %11, %5, %12 : vector<8x1xi1>, vector<8x1xf32>
    %14 = vector.shape_cast %13 : vector<8x1xf32> to vector<1x8x1xf32>
    %cst_6 = arith.constant dense<0.000000e+00> : vector<1xf32>
    %15 = vector.multi_reduction <add>, %14, %cst_6 [1, 2] : vector<1x8x1xf32> to vector<1xf32>
    %16 = vector.shape_cast %15 : vector<1xf32> to vector<1x1x1xf32>
    %17 = vector.extract %16[0, 0, 0] : f32 from vector<1x1x1xf32>
    %c0_7 = arith.constant 0 : index
    %c0_8 = arith.constant 0 : index
    %18 = memref.load %arg4[%c0_7, %c0_8] : memref<1x1xf32, #tpu.memory_space<smem>>
    memref.store %17, %arg4[%c0_7, %c0_8] : memref<1x1xf32, #tpu.memory_space<smem>>
    return
  }
  func.func @transform_0(%arg0: i32) -> (i32, i32) {
    %c0_i32 = arith.constant 0 : i32
    %c0_i32_0 = arith.constant 0 : i32
    return %arg0, %c0_i32 : i32, i32
  }
  func.func @transform_1(%arg0: i32) -> (i32, i32) {
    %c0_i32 = arith.constant 0 : i32
    %c0_i32_0 = arith.constant 0 : i32
    return %arg0, %c0_i32 : i32, i32
  }
  func.func @transform_2(%arg0: i32) -> (i32, i32) {
    %c0_i32 = arith.constant 0 : i32
    %c0_i32_0 = arith.constant 0 : i32
    %c0_i32_1 = arith.constant 0 : i32
    return %c0_i32, %c0_i32_0 : i32, i32
  }
  func.func @transform_3(%arg0: i32) -> (i32, i32) {
    %c0_i32 = arith.constant 0 : i32
    %c0_i32_0 = arith.constant 0 : i32
    return %arg0, %c0_i32 : i32, i32
  }
}

</mosaic_0001>

<llo_original>
// kernel: tpu_custom_call.1
$region0: #{tpu_custom_call.1}
  #allocation0 [shape = 'u32[]', space=smem, size = 0x4, offset = 0x4, fixed_abs, tag = 'smem constant byte address 0x4 - core index']
  #allocation1 [shape = 'u32[144,128]{1,0:T(1,128)}', space=vmem, size = 0x12000, scoped, tag = 'internal scratch']
  %s0 = inlined_call_operand.vmem [shape: f32[2,256], index: 0, kind: input, shape index: {}]
  %s1 = inlined_call_operand.vmem [shape: f32[2,256], index: 1, kind: input, shape index: {}]
  %s2 = inlined_call_operand.vmem [shape: f32[256,1], index: 2, kind: input, shape index: {}]
  %s3 = inlined_call_operand.hbm [shape: f32[1,1], index: 3, kind: output, shape index: {}]
  %s4 = sld [smem:[#allocation0]]
  $region22: #{tpu_custom_call.1} parent=0
    _
  %s6 = ssub.s32 1, %s4
  %s7 = scalar_select 0, %s6, %s4
  $region1: #{tpu_custom_call.1} parent=0
    #allocation2 [shape = 'u8[512]{0}', space=smem, size = 0x200, scoped, tag = 'output window, operand 0, single buffered']
    #allocation3 [shape = 's32[1]{0}', space=sflag, size = 0x4, scoped, tag = 'scoped memory for tpu_custom_call.1']
    %8 = vsyncpa [#allocation3], 0
    // Predicated region
    $region2: #{tpu_custom_call.1} parent=1 // pred_check
      _
    $region3: #{tpu_custom_call.1} parent=1 // pred_check_branch
      %10 = sbr.rel (0) target = $region5
    $region4: #{tpu_custom_call.1} parent=1 // pred_region
      _
    $region5: #{tpu_custom_call.1} parent=1 // pred_fallthru
      _
    // Predicated region
    $region6: #{tpu_custom_call.1} parent=1 // pred_check
      _
    $region7: #{tpu_custom_call.1} parent=1 // pred_check_branch
      %12 = sbr.rel (0) target = $region9
    $region8: #{tpu_custom_call.1} parent=1 // pred_region
      _
    $region9: #{tpu_custom_call.1} parent=1 // pred_fallthru
      _
    // Predicated region
    $region10: #{tpu_custom_call.1} parent=1 // pred_check
      _
    $region11: #{tpu_custom_call.1} parent=1 // pred_check_branch
      %14 = sbr.rel (0) target = $region13
    $region12: #{tpu_custom_call.1} parent=1 // pred_region
      _
    $region13: #{tpu_custom_call.1} parent=1 // pred_fallthru
      _
    %v15 = vld [vmem:[%s0] sm:$0xf]
    %v16 = vld [vmem:[%s0 + $0x4] sm:$0xf]
    %v17 = vld [vmem:[%s0 + $0x8] sm:$0xf]
    %v18 = vld [vmem:[%s0 + $0xc] sm:$0xf]
    %v19 = vld [vmem:[%s1] sm:$0xf]
    %v20 = vld [vmem:[%s1 + $0x4] sm:$0xf]
    %v21 = vld [vmem:[%s1 + $0x8] sm:$0xf]
    %v22 = vld [vmem:[%s1 + $0xc] sm:$0xf]
    %v23 = vsub.f32 %v15, %v19
    %v24 = vsub.f32 %v16, %v20
    %v25 = vsub.f32 %v17, %v21
    %v26 = vsub.f32 %v18, %v22
    %v27 = vand.u32 2147483647, %v23
    %v28 = vand.u32 2147483647, %v24
    %v29 = vand.u32 2147483647, %v25
    %v30 = vand.u32 2147483647, %v26
    %v31 = vld [vmem:[%s2] sm:$0xff]
    %v32 = vld [vmem:[%s2 + $0x8] sm:$0xff]
    %v33 = vld [vmem:[%s2 + $0x10] sm:$0xff]
    %v34 = vld [vmem:[%s2 + $0x18] sm:$0xff]
    %v35 = vld [vmem:[%s2 + $0x20] sm:$0xff]
    %v36 = vld [vmem:[%s2 + $0x28] sm:$0xff]
    %v37 = vld [vmem:[%s2 + $0x30] sm:$0xff]
    %v38 = vld [vmem:[%s2 + $0x38] sm:$0xff]
    %v39 = vld [vmem:[%s2 + $0x40] sm:$0xff]
    %v40 = vld [vmem:[%s2 + $0x48] sm:$0xff]
    %v41 = vld [vmem:[%s2 + $0x50] sm:$0xff]
    %v42 = vld [vmem:[%s2 + $0x58] sm:$0xff]
    %v43 = vld [vmem:[%s2 + $0x60] sm:$0xff]
    %v44 = vld [vmem:[%s2 + $0x68] sm:$0xff]
    %v45 = vld [vmem:[%s2 + $0x70] sm:$0xff]
    %v46 = vld [vmem:[%s2 + $0x78] sm:$0xff]
    %v47 = vld [vmem:[%s2 + $0x80] sm:$0xff]
    %v48 = vld [vmem:[%s2 + $0x88] sm:$0xff]
    %v49 = vld [vmem:[%s2 + $0x90] sm:$0xff]
    %v50 = vld [vmem:[%s2 + $0x98] sm:$0xff]
    %v51 = vld [vmem:[%s2 + $0xa0] sm:$0xff]
    %v52 = vld [vmem:[%s2 + $0xa8] sm:$0xff]
    %v53 = vld [vmem:[%s2 + $0xb0] sm:$0xff]
    %v54 = vld [vmem:[%s2 + $0xb8] sm:$0xff]
    %v55 = vld [vmem:[%s2 + $0xc0] sm:$0xff]
    %v56 = vld [vmem:[%s2 + $0xc8] sm:$0xff]
    %v57 = vld [vmem:[%s2 + $0xd0] sm:$0xff]
    %v58 = vld [vmem:[%s2 + $0xd8] sm:$0xff]
    %v59 = vld [vmem:[%s2 + $0xe0] sm:$0xff]
    %v60 = vld [vmem:[%s2 + $0xe8] sm:$0xff]
    %v61 = vld [vmem:[%s2 + $0xf0] sm:$0xff]
    %v62 = vld [vmem:[%s2 + $0xf8] sm:$0xff]
    %v67 = vcombine.low %v27, %v28
    %v68 = vcombine.low %v29, %v30
    %v70 = vunpack.c.l.s4 1983009808
    %v71 = vunpack.c.0.s8 %v70
    %v72 = vlaneseq
    %v73 = vshrl.u32 %v72, 7
    %v74 = vsub.s32 %v71, %v73
    %v75 = vrot.slane %v67, %v74
    %v77 = vunpack.c.l.s4 1983009808
    %v78 = vunpack.c.0.s8 %v77
    %v79 = vlaneseq
    %v80 = vshrl.u32 %v79, 7
    %v81 = vsub.s32 %v78, %v80
    %v82 = vrot.slane %v68, %v81
    %v83 = vcombine.low %v75, %v82
    %v84 = vcombine.high %v75, %v82
    %87 = vmatprep.subr.mxu0 0.0
    %88 = vmatpush1.msra.mxu0 %v31
    %89 = vmatprep.subr.mxu0 0.0
    %90 = vmatpush1.msra.mxu0 %v32
    %91 = vmatprep.subr.mxu0 0.0
    %92 = vmatpush1.msra.mxu0 %v33
    %93 = vmatprep.subr.mxu0 0.0
    %94 = vmatpush1.msra.mxu0 %v34
    %95 = vmatprep.subr.mxu0 0.0
    %96 = vmatpush1.msra.mxu0 %v35
    %97 = vmatprep.subr.mxu0 0.0
    %98 = vmatpush1.msra.mxu0 %v36
    %99 = vmatprep.subr.mxu0 0.0
    %100 = vmatpush1.msra.mxu0 %v37
    %101 = vmatprep.subr.mxu0 0.0
    %102 = vmatpush1.msra.mxu0 %v38
    %103 = vmatprep.subr.mxu0 0.0
    %104 = vmatpush1.msra.mxu0 %v39
    %105 = vmatprep.subr.mxu0 0.0
    %106 = vmatpush1.msra.mxu0 %v40
    %107 = vmatprep.subr.mxu0 0.0
    %108 = vmatpush1.msra.mxu0 %v41
    %109 = vmatprep.subr.mxu0 0.0
    %110 = vmatpush1.msra.mxu0 %v42
    %111 = vmatprep.subr.mxu0 0.0
    %112 = vmatpush1.msra.mxu0 %v43
    %113 = vmatprep.subr.mxu0 0.0
    %114 = vmatpush1.msra.mxu0 %v44
    %115 = vmatprep.subr.mxu0 0.0
    %116 = vmatpush1.msra.mxu0 %v45
    %117 = vmatprep.subr.mxu0 0.0
    %118 = vmatpush1.msra.mxu0 %v46
    %119 = vmatprep.subr.mxu0 0.0
    %120 = vmatpush1.msra.mxu0 %v47
    %121 = vmatprep.subr.mxu0 0.0
    %122 = vmatpush1.msra.mxu0 %v48
    %123 = vmatprep.subr.mxu0 0.0
    %124 = vmatpush1.msra.mxu0 %v49
    %125 = vmatprep.subr.mxu0 0.0
    %126 = vmatpush1.msra.mxu0 %v50
    %127 = vmatprep.subr.mxu0 0.0
    %128 = vmatpush1.msra.mxu0 %v51
    %129 = vmatprep.subr.mxu0 0.0
    %130 = vmatpush1.msra.mxu0 %v52
    %131 = vmatprep.subr.mxu0 0.0
    %132 = vmatpush1.msra.mxu0 %v53
    %133 = vmatprep.subr.mxu0 0.0
    %134 = vmatpush1.msra.mxu0 %v54
    %135 = vmatprep.subr.mxu0 0.0
    %136 = vmatpush1.msra.mxu0 %v55
    %137 = vmatprep.subr.mxu0 0.0
    %138 = vmatpush1.msra.mxu0 %v56
    %139 = vmatprep.subr.mxu0 0.0
    %140 = vmatpush1.msra.mxu0 %v57
    %141 = vmatprep.subr.mxu0 0.0
    %142 = vmatpush1.msra.mxu0 %v58
    %143 = vmatprep.subr.mxu0 0.0
    %144 = vmatpush1.msra.mxu0 %v59
    %145 = vmatprep.subr.mxu0 0.0
    %146 = vmatpush1.msra.mxu0 %v60
    %147 = vmatprep.subr.mxu0 0.0
    %148 = vmatpush1.msra.mxu0 %v61
    %149 = vmatprep.subr.mxu0 0.0
    %150 = vmatpush1.msra.mxu0 %v62
    %151 = vmatprep.mubr.f32.mxu0 %v84
    %152 = vmatmul.mubr.f32.gmra.mrb[0].mxu0 %v83
    %v153 = vpop.f32.mrb[0].mxu0
    %v154 = vadd.f32 0.0, %v153
    %v155 = vpop.f32.mrb[0].mxu0
    %156 = vdwg.mxu0
    %s157 = smul.u32 0, 8
    %v158 = vlaneseq
    %v159 = vshrl.u32 %v158, 7
    %v160 = vstv %s157
    %v161 = vadd.s32 %v160, %v159
    %vm162 = vcmp.lt.s32.totalorder %v161, 2
    %v163 = vsel %vm162, %v154, 0.0
    %vm164 = vcmask 7168
    %v165 = vsel %vm164, %v163, 0.0
    %166 = vadd.xlane.f32.xlu0 %v165
    %v167 = vpop.xlane.xlu0 %166
    %v168 = vrot.slane %v167, 4
    %v169 = vadd.f32 %v167, %v168
    %v170 = vrot.slane %v169, 2
    %v171 = vadd.f32 %v169, %v170
    %v172 = vrot.slane %v171, 1
    %v173 = vadd.f32 %v171, %v172
    %s174 = vtos %v173
    %s175 = scalar_lea.smem [#allocation2], 0
    %176 = sst [smem:[%s175]] %s174
    // Predicated region
    $region14: #{tpu_custom_call.1} parent=1 // pred_check
      _
    $region15: #{tpu_custom_call.1} parent=1 // pred_check_branch
      %178 = sbr.rel (0) target = $region17
    $region16: #{tpu_custom_call.1} parent=1 // pred_region
      %s180 = ssub.s32 16, 16
      %181 = vsyncadd [#allocation3], %s180
      %184 = dma.smem_to_hbm [#allocation2], 16, %s3, [#allocation3]
    $region17: #{tpu_custom_call.1} parent=1 // pred_fallthru
      _
    // Predicated region
    $region18: #{tpu_custom_call.1} parent=1 // pred_check
      _
    $region19: #{tpu_custom_call.1} parent=1 // pred_check_branch
      %186 = sbr.rel (0) target = $region21
    $region20: #{tpu_custom_call.1} parent=1 // pred_region
      %187 = dma.done [#allocation3], 16
    $region21: #{tpu_custom_call.1} parent=1 // pred_fallthru
      _
    %188 = sfence
    %189 = vsyncpa [#allocation3], 1

</llo_original>
